<compile_context>
chip_gen: v7x
topology: tpu7x:2x2x1
jax: 0.10.0
libtpu: 0.0.40
codegen_flags: <defaults>
</compile_context>

<pallas_src>
import functools

import jax
import jax.numpy as jnp
from jax import lax
from jax.experimental import pallas as pl
from jax.experimental.pallas import tpu as pltpu

_LANE = 128


def _recon_loss_kernel(p_ref, yp_ref, y_ref, out_ref, *, true_batch, tile_b, mask_tail):
    """One batch tile: write per-lane partial sums of p * (yp - y)^2 over steps."""
    # Stream inputs in their storage dtype (bf16 welcome); compute in f32.
    p = p_ref[...].astype(jnp.float32)     # (S, TB)
    yp = yp_ref[...].astype(jnp.float32)   # (S, TB)
    y = y_ref[...].astype(jnp.float32)     # (1, TB) -> broadcasts over steps

    diff = yp - y                          # element-wise squared-error loss_func
    per_elem = p * diff * diff             # weighted by halting probability

    if mask_tail:
        # Only the last (overhanging) tile has invalid lanes; the compare+select
        # is a couple of VPU ops hidden under the DMA stream. Using where (a
        # select) keeps garbage / NaN tail data from propagating.
        lane = lax.broadcasted_iota(jnp.int32, (1, tile_b), 1)
        valid = (pl.program_id(0) * tile_b + lane) < true_batch
        per_elem = jnp.where(valid, per_elem, 0.0)

    # Sublane reduction over the step axis only (mostly VPU vreg adds); the
    # result is a lane-dense (1, TB) block -> unmasked vector stores.
    out_ref[...] = jnp.sum(per_elem, axis=0, keepdims=True)


def reconstruction_loss(p, y_pred, y, *, target_block_bytes=None):
    """p, y_pred: (max_steps, batch); y: (batch,) -> scalar f32 loss.

    total_loss = sum_n mean_b( p[n, b] * (y_pred[n, b] - y[b])**2 )
    """
    S, B = p.shape
    assert y_pred.shape == (S, B) and y.shape == (B,)

    itemsize = max(jnp.dtype(p.dtype).itemsize, jnp.dtype(y_pred.dtype).itemsize)

    # Chip-aware block-byte target: ~8 MiB per input block everywhere (already
    # ~85%+ of HBM roofline), ~16 MiB when the chip has big (128 MiB) VMEM.
    if target_block_bytes is None:
        try:
            vmem_cap = int(pltpu.get_tpu_info().vmem_capacity_bytes)
        except Exception:
            vmem_cap = 64 << 20  # conservative (v7x-sized) fallback
        target_block_bytes = (16 << 20) if vmem_cap >= (100 << 20) else (8 << 20)

    # Lane-dense batch tile derived from the byte budget (scales with S and dtype),
    # never wider than the lane-rounded full batch.
    b_full = pl.cdiv(B, _LANE) * _LANE
    tb = (int(target_block_bytes) // (S * itemsize)) // _LANE * _LANE
    tb = int(max(_LANE, min(tb, b_full)))

    n_tiles = pl.cdiv(B, tb)              # last tile may overhang; masked in-kernel
    mask_tail = (B % tb) != 0
    out_cols = n_tiles * tb               # output array is exactly tile-aligned

    y2d = y.reshape(1, B)

    # VMEM budget: 2 inputs x 2 pipeline buffers of (S, tb) plus the y row and
    # the (1, tb) output, with slack. tb was sized from the budget, so this is
    # always well under v7x's 64 MiB physical VMEM (and far under v5e/v6e's 128 MiB).
    in_bytes = 2 * 2 * S * tb * itemsize
    extra_bytes = 2 * tb * jnp.dtype(y.dtype).itemsize + 2 * tb * 4
    vmem_limit = int(min(max(in_bytes + extra_bytes + (2 << 20), 32 << 20), 100 << 20))

    kernel = functools.partial(
        _recon_loss_kernel, true_batch=B, tile_b=tb, mask_tail=mask_tail
    )

    partials = pl.pallas_call(
        kernel,
        out_shape=jax.ShapeDtypeStruct((1, out_cols), jnp.float32),
        grid=(n_tiles,),
        in_specs=[
            pl.BlockSpec((S, tb), lambda i: (0, i)),   # p
            pl.BlockSpec((S, tb), lambda i: (0, i)),   # y_pred
            pl.BlockSpec((1, tb), lambda i: (0, i)),   # y (broadcast row)
        ],
        out_specs=pl.BlockSpec((1, tb), lambda i: (0, i)),
        compiler_params=pltpu.CompilerParams(
            dimension_semantics=("parallel",),         # no cross-tile state -> v7x 2 TCs
            vmem_limit_bytes=vmem_limit,
        ),
    )(p, y_pred, y2d)

    # Tiny final reduction + mean over the TRUE batch size (masked tail lanes are 0).
    return jnp.sum(partials) * jnp.float32(1.0 / B)


if __name__ == "__main__":
    key = jax.random.PRNGKey(0)
    k1, k2, k3 = jax.random.split(key, 3)

    max_steps, batch = 8, 32
    # Halting probabilities: softmax across the step axis so they sum to 1 per sample.
    logits = jax.random.normal(k1, (max_steps, batch), dtype=jnp.float32)
    p = jax.nn.softmax(logits, axis=0)
    y_pred = jax.random.normal(k2, (max_steps, batch), dtype=jnp.float32)
    y = jax.random.normal(k3, (batch,), dtype=jnp.float32)

    # f32 path (single overhanging tile, tail masking exercised).
    loss = jax.block_until_ready(reconstruction_loss(p, y_pred, y))
    ref = jnp.sum(jnp.mean(p * (y_pred - y[None, :]) ** 2, axis=1))
    assert jnp.allclose(loss, ref, rtol=1e-5, atol=1e-6), (loss, ref)

    # Multi-tile + ragged tail path: force tb=128 so batch=300 -> 3 tiles, masked last tile.
    batch2 = 300
    k4, k5, k6 = jax.random.split(jax.random.PRNGKey(1), 3)
    p2 = jax.nn.softmax(jax.random.normal(k4, (max_steps, batch2), jnp.float32), axis=0)
    yp2 = jax.random.normal(k5, (max_steps, batch2), dtype=jnp.float32)
    y2 = jax.random.normal(k6, (batch2,), dtype=jnp.float32)
    loss2 = jax.block_until_ready(
        reconstruction_loss(p2, yp2, y2, target_block_bytes=max_steps * _LANE * 4)
    )
    ref2 = jnp.sum(jnp.mean(p2 * (yp2 - y2[None, :]) ** 2, axis=1))
    assert jnp.allclose(loss2, ref2, rtol=1e-5, atol=1e-6), (loss2, ref2)

    # bf16 streaming path — inputs stored bf16, arithmetic stays f32 in-kernel.
    p_bf = p.astype(jnp.bfloat16)
    yp_bf = y_pred.astype(jnp.bfloat16)
    y_bf = y.astype(jnp.bfloat16)
    loss_bf = jax.block_until_ready(reconstruction_loss(p_bf, yp_bf, y_bf))
    ref_bf = jnp.sum(
        jnp.mean(
            p_bf.astype(jnp.float32)
            * (yp_bf.astype(jnp.float32) - y_bf.astype(jnp.float32)[None, :]) ** 2,
            axis=1,
        )
    )
    assert jnp.allclose(loss_bf, ref_bf, rtol=1e-3, atol=1e-4), (loss_bf, ref_bf)

    # TODO(synk): arbitrary user-supplied loss_func is not expressible generically;
    # element-wise squared error is hard-coded.
    print("KERNEL_OK")
</pallas_src>

<mosaic_0001>
module attributes {stable_mosaic.version = 11 : i64} {
  func.func @_recon_loss_kernel(%arg0: i32, %arg1: memref<8x128xf32, #tpu.memory_space<vmem>>, %arg2: memref<8x128xf32, #tpu.memory_space<vmem>>, %arg3: memref<1x128xf32, #tpu.memory_space<vmem>>, %arg4: memref<1x128xf32, #tpu.memory_space<vmem>>) attributes {dimension_semantics = [#tpu.dimension_semantics<parallel>], iteration_bounds = array<i64: 1>, scalar_prefetch = 0 : i64, scratch_operands = 0 : i64, tpu.core_type = #tpu.core_type<tc>, window_params = [{transform_indices = @transform_0, window_bounds = array<i64: 8, 128>}, {transform_indices = @transform_1, window_bounds = array<i64: 8, 128>}, {transform_indices = @transform_2, window_bounds = array<i64: 1, 128>}, {transform_indices = @transform_3, window_bounds = array<i64: 1, 128>}]} {
    %c0 = arith.constant 0 : index
    %c0_0 = arith.constant 0 : index
    %0 = vector.load %arg1[%c0, %c0_0] : memref<8x128xf32, #tpu.memory_space<vmem>>, vector<8x128xf32>
    %c0_1 = arith.constant 0 : index
    %c0_2 = arith.constant 0 : index
    %1 = vector.load %arg2[%c0_1, %c0_2] : memref<8x128xf32, #tpu.memory_space<vmem>>, vector<8x128xf32>
    %c0_3 = arith.constant 0 : index
    %c0_4 = arith.constant 0 : index
    %2 = vector.load %arg3[%c0_3, %c0_4] : memref<1x128xf32, #tpu.memory_space<vmem>>, vector<1x128xf32>
    %3 = vector.broadcast %2 : vector<1x128xf32> to vector<8x128xf32>
    %4 = arith.subf %1, %3 : vector<8x128xf32>
    %5 = arith.mulf %0, %4 : vector<8x128xf32>
    %6 = arith.mulf %5, %4 : vector<8x128xf32>
    %7 = tpu.iota {dimensions = array<i32: 1>} : vector<1x128xi32>
    %c128_i32 = arith.constant 128 : i32
    %8 = arith.muli %arg0, %c128_i32 : i32
    %9 = vector.broadcast %8 : i32 to vector<1x128xi32>
    %10 = arith.addi %9, %7 : vector<1x128xi32>
    %c32_i32 = arith.constant 32 : i32
    %11 = vector.broadcast %c32_i32 : i32 to vector<1x128xi32>
    %12 = arith.cmpi slt, %10, %11 : vector<1x128xi32>
    %cst = arith.constant 0.000000e+00 : f32
    %13 = vector.shape_cast %12 : vector<1x128xi1> to vector<1x128xi1>
    %14 = vector.broadcast %13 : vector<1x128xi1> to vector<8x128xi1>
    %15 = vector.broadcast %cst : f32 to vector<8x128xf32>
    %16 = arith.select %14, %6, %15 : vector<8x128xi1>, vector<8x128xf32>
    %cst_5 = arith.constant dense<0.000000e+00> : vector<128xf32>
    %17 = vector.multi_reduction <add>, %16, %cst_5 [0] : vector<8x128xf32> to vector<128xf32>
    %18 = vector.shape_cast %17 : vector<128xf32> to vector<1x128xf32>
    %c0_6 = arith.constant 0 : index
    %c0_7 = arith.constant 0 : index
    %19 = vector.load %arg4[%c0_6, %c0_7] : memref<1x128xf32, #tpu.memory_space<vmem>>, vector<1x128xf32>
    tpu.vector_store %arg4[%c0_6, %c0_7], %18 {strides = array<i32>} : memref<1x128xf32, #tpu.memory_space<vmem>>, vector<1x128xf32>,
    return
  }
  func.func @transform_0(%arg0: i32) -> (i32, i32) {
    %c0_i32 = arith.constant 0 : i32
    %c0_i32_0 = arith.constant 0 : i32
    return %c0_i32, %arg0 : i32, i32
  }
  func.func @transform_1(%arg0: i32) -> (i32, i32) {
    %c0_i32 = arith.constant 0 : i32
    %c0_i32_0 = arith.constant 0 : i32
    return %c0_i32, %arg0 : i32, i32
  }
  func.func @transform_2(%arg0: i32) -> (i32, i32) {
    %c0_i32 = arith.constant 0 : i32
    %c0_i32_0 = arith.constant 0 : i32
    return %c0_i32, %arg0 : i32, i32
  }
  func.func @transform_3(%arg0: i32) -> (i32, i32) {
    %c0_i32 = arith.constant 0 : i32
    %c0_i32_0 = arith.constant 0 : i32
    return %c0_i32, %arg0 : i32, i32
  }
}

</mosaic_0001>

<llo_original>
// kernel: tpu_custom_call.1
$region0: #{tpu_custom_call.1}
  #allocation0 [shape = 'u32[]', space=smem, size = 0x4, offset = 0x4, fixed_abs, tag = 'smem constant byte address 0x4 - core index']
  #allocation1 [shape = 'u32[144,128]{1,0:T(1,128)}', space=vmem, size = 0x12000, scoped, tag = 'internal scratch']
  %s0 = inlined_call_operand.hbm [shape: f32[8,32], index: 0, kind: input, shape index: {}]
  %s1 = inlined_call_operand.hbm [shape: f32[8,32], index: 1, kind: input, shape index: {}]
  %s2 = inlined_call_operand.vmem [shape: f32[1,32], index: 2, kind: input, shape index: {}]
  %s3 = inlined_call_operand.hbm [shape: f32[1,128], index: 3, kind: output, shape index: {}]
  %s4 = sld [smem:[#allocation0]]
  $region30: #{tpu_custom_call.1} parent=0
    _
  %s6 = ssub.s32 1, %s4
  %s7 = scalar_select 0, %s6, %s4
  $region1: #{tpu_custom_call.1} parent=0
    #allocation2 [shape = 'u8[4096]{0}', space=vmem, size = 0x1000, scoped, tag = 'input window, operand 0, single buffered']
    #allocation3 [shape = 's32[1]{0}', space=sflag, size = 0x4, scoped, tag = 'scoped memory for tpu_custom_call.1']
    #allocation4 [shape = 's32[1]{0}', space=sflag, size = 0x4, scoped, tag = 'scoped memory for tpu_custom_call.1']
    #allocation5 [shape = 'u8[4096]{0}', space=vmem, size = 0x1000, scoped, tag = 'input window, operand 1, single buffered']
    #allocation6 [shape = 's32[1]{0}', space=sflag, size = 0x4, scoped, tag = 'scoped memory for tpu_custom_call.1']
    #allocation7 [shape = 'u8[512]{0}', space=vmem, size = 0x400, scoped, tag = 'output window, operand 0, single buffered']
    %8 = vsyncpa [#allocation3], 0
    %9 = vsyncpa [#allocation6], 0
    %10 = vsyncpa [#allocation4], 0
    // Predicated region
    $region2: #{tpu_custom_call.1} parent=1 // pred_check
      _
    $region3: #{tpu_custom_call.1} parent=1 // pred_check_branch
      %12 = sbr.rel (0) target = $region5
    $region4: #{tpu_custom_call.1} parent=1 // pred_region
      %s14 = ssub.s32 128, 128
      %15 = vsyncadd [#allocation3], %s14
      %s17 = sshll.u32 [#allocation2], 4
      %s18 = int_to_ptr.vmem [resolvable:$true] %s17
      %20 = dma.hbm_to_vmem [thread:$0]  %s0, 128, %s18, [#allocation3]
    $region5: #{tpu_custom_call.1} parent=1 // pred_fallthru
      _
    // Predicated region
    $region6: #{tpu_custom_call.1} parent=1 // pred_check
      _
    $region7: #{tpu_custom_call.1} parent=1 // pred_check_branch
      %22 = sbr.rel (0) target = $region9
    $region8: #{tpu_custom_call.1} parent=1 // pred_region
      %s24 = ssub.s32 128, 128
      %25 = vsyncadd [#allocation6], %s24
      %s27 = sshll.u32 [#allocation5], 4
      %s28 = int_to_ptr.vmem [resolvable:$true] %s27
      %30 = dma.hbm_to_vmem [thread:$0]  %s1, 128, %s28, [#allocation6]
    $region9: #{tpu_custom_call.1} parent=1 // pred_fallthru
      _
    // Predicated region
    $region10: #{tpu_custom_call.1} parent=1 // pred_check
      _
    $region11: #{tpu_custom_call.1} parent=1 // pred_check_branch
      %32 = sbr.rel (0) target = $region13
    $region12: #{tpu_custom_call.1} parent=1 // pred_region
      _
    $region13: #{tpu_custom_call.1} parent=1 // pred_fallthru
      _
    // Predicated region
    $region14: #{tpu_custom_call.1} parent=1 // pred_check
      _
    $region15: #{tpu_custom_call.1} parent=1 // pred_check_branch
      %34 = sbr.rel (0) target = $region17
    $region16: #{tpu_custom_call.1} parent=1 // pred_region
      %35 = dma.done [#allocation3], 128
    $region17: #{tpu_custom_call.1} parent=1 // pred_fallthru
      _
    // Predicated region
    $region18: #{tpu_custom_call.1} parent=1 // pred_check
      _
    $region19: #{tpu_custom_call.1} parent=1 // pred_check_branch
      %37 = sbr.rel (0) target = $region21
    $region20: #{tpu_custom_call.1} parent=1 // pred_region
      %38 = dma.done [#allocation6], 128
    $region21: #{tpu_custom_call.1} parent=1 // pred_fallthru
      _
    %v39 = vld [vmem:[#allocation2] sm:$0xff]
    %v40 = vld [vmem:[#allocation5] sm:$0xff]
    %v41 = vld [vmem:[%s2] sm:$0x1]
    %v43 = vlaneseq
    %v44 = vshrl.u32 %v43, 7
    %v45 = vsub.s32 0, %v44
    %v46 = vrot.slane %v41, %v45
    %v48 = vsub.f32 %v40, %v46
    %v49 = vmul.f32 %v39, %v48
    %v50 = vmul.f32 %v49, %v48
    %v51 = vlaneseq
    %v52 = vand.u32 %v51, 127
    %s53 = smul.u32 0, 128
    %v54 = vstv %s53
    %v55 = vadd.s32 %v54, %v52
    %vm56 = vcmp.lt.s32.totalorder %v55, 32
    %v57 = vsel %vm56, 1, 0
    %vm58 = vcmp.eq.s32.totalorder %v57, 1
    %v59 = vsel %vm58, %v50, 0.0
    %v60 = vrot.slane %v59, 4
    %v61 = vadd.f32 %v59, %v60
    %v62 = vrot.slane %v61, 2
    %v63 = vadd.f32 %v61, %v62
    %v64 = vrot.slane %v63, 1
    %v65 = vadd.f32 %v63, %v64
    %66 = vst [vmem:[#allocation7] sm:$0x1] %v65
    // Predicated region
    $region22: #{tpu_custom_call.1} parent=1 // pred_check
      _
    $region23: #{tpu_custom_call.1} parent=1 // pred_check_branch
      %68 = sbr.rel (0) target = $region25
    $region24: #{tpu_custom_call.1} parent=1 // pred_region
      %s70 = ssub.s32 16, 16
      %71 = vsyncadd [#allocation4], %s70
      %s73 = sshll.u32 [#allocation7], 4
      %s74 = int_to_ptr.vmem [resolvable:$true] %s73
      %76 = dma.vmem_to_hbm [thread:$0]  %s74, 16, %s3, [#allocation4]
    $region25: #{tpu_custom_call.1} parent=1 // pred_fallthru
      _
    // Predicated region
    $region26: #{tpu_custom_call.1} parent=1 // pred_check
      _
    $region27: #{tpu_custom_call.1} parent=1 // pred_check_branch
      %78 = sbr.rel (0) target = $region29
    $region28: #{tpu_custom_call.1} parent=1 // pred_region
      %79 = dma.done [#allocation4], 16
    $region29: #{tpu_custom_call.1} parent=1 // pred_fallthru
      _
    %80 = vsyncpa [#allocation3], 1
    %81 = vsyncpa [#allocation6], 1
    %82 = vsyncpa [#allocation4], 1

</llo_original>
